<compile_context>
chip_gen: v6e
topology: v6e:2x2x1
jax: 0.10.0
libtpu: 0.0.40
codegen_flags: <defaults>
</compile_context>

<pallas_src>
import jax
import jax.numpy as jnp
from jax import lax
from jax.experimental import pallas as pl
from jax.experimental.pallas import tpu as pltpu


def _bottleneck_kernel(x_ref, w1_ref, w2_ref, s1_ref, t1_ref,
                       s23_ref, s3_ref, t23_ref, o_ref, slab_ref):
    # x_ref   : (Nb, H, W*Cin)  f32      w1_ref : (W*Cin, W*Cmid)   bf16
    # w2_ref  : (3*W*Cmid, W*Cout) bf16  s*/t*  : (1, W*C)          f32
    # slab_ref: (Nb, H, 3*W*Cmid) bf16 VMEM scratch (row-im2col slab)
    Nb, H, WCin = x_ref.shape
    WCmid = w1_ref.shape[1]
    WCout = o_ref.shape[2]

    # Residual path stays in f32 (exact).
    x2 = x_ref[...].reshape(Nb * H, WCin)

    # ---- reduce: 1x1 conv as ONE lane-dense matmul (bf16 MXU, f32 acc) ----
    mid = jnp.dot(x2.astype(jnp.bfloat16), w1_ref[...],
                  preferred_element_type=jnp.float32)
    mid = jnp.maximum(mid * s1_ref[...] + t1_ref[...], 0.0)   # folded bias+BN1+ReLU
    mid3 = mid.astype(jnp.bfloat16).reshape(Nb, H, WCmid)

    # ---- build row-im2col slab: [row h-1 | row h | row h+1] per output row.
    # Only the two boundary rows are zero-filled; interior is fully written
    # every grid step (no full pad-buffer zeroing, parallel-safe).
    zrow = jnp.zeros((Nb, 1, WCmid), jnp.bfloat16)
    slab_ref[:, :, WCmid:2 * WCmid] = mid3                       # center (dh=1)
    slab_ref[:, 1:, 0:WCmid] = mid3[:, :H - 1, :]                # top    (dh=0)
    slab_ref[:, 0:1, 0:WCmid] = zrow
    slab_ref[:, :H - 1, 2 * WCmid:3 * WCmid] = mid3[:, 1:, :]    # bottom (dh=2)
    slab_ref[:, H - 1:H, 2 * WCmid:3 * WCmid] = zrow

    # ---- conv2: single fused MXU contraction, K = 3*W*Cmid (all 9 taps and
    # the horizontal zero padding are folded into the banded weight).
    conv = jnp.dot(slab_ref[...].reshape(Nb * H, 3 * WCmid), w2_ref[...],
                   preferred_element_type=jnp.float32)

    # ---- fused (conv2-bias + BN2 + BN3) affine + residual + ReLU, all f32 ----
    out = conv * s23_ref[...] + x2 * s3_ref[...] + t23_ref[...]
    out = jnp.maximum(out, 0.0)
    o_ref[...] = out.reshape(Nb, H, WCout).astype(o_ref.dtype)


def _pick_batch_block(N, H, W, Cin, Cout, Cmid, budget_bytes=8 * 1024 * 1024):
    """Largest divisor of N whose double-buffered in/out blocks + slab scratch
    stay well under the scoped-VMEM default (conservative for v7x's 32 MiB)."""
    best = 1
    for nb in range(1, N + 1):
        if N % nb:
            continue
        need = (2 * nb * H * W * (Cin + Cout) * 4      # dbl-buffered x/out blocks
                + nb * H * 3 * W * Cmid * 2)           # bf16 im2col slab
        if need <= budget_bytes:
            best = nb
    return best


def bottleneck_v2_forward(x_nchw, p, eps=1e-5):
    """Wrapper: NCHW in/out; folds BN+bias, builds lane-dense banded weights."""
    x = jnp.transpose(x_nchw, (0, 2, 3, 1)).astype(jnp.float32)  # -> NHWC
    N, H, W, Cin = x.shape
    Cmid = p['w1'].shape[1]
    Cout = p['w2'].shape[3]
    assert Cout == Cin, "residual add requires planes == inplanes"

    # Fold conv bias + eval-mode BatchNorm into per-channel scale/shift.
    s1 = p['g1'] / jnp.sqrt(p['v1'] + eps)
    t1 = (p['b1'] - p['m1']) * s1 + p['be1']
    s2 = p['g2'] / jnp.sqrt(p['v2'] + eps)
    t2 = (p['b2'] - p['m2']) * s2 + p['be2']
    s3 = p['g3'] / jnp.sqrt(p['v3'] + eps)
    t3 = (0.0 - p['m3']) * s3 + p['be3']
    # Fuse BN2 + BN3 into a single affine: out = conv*s23 + x*s3 + t23.
    s23 = s2 * s3
    t23 = t2 * s3 + t3

    WCin, WCmid, WCout = W * Cin, W * Cmid, W * Cout

    # Lane-dense views: channels folded into the W axis (free reshape on NHWC).
    x3 = x.reshape(N, H, WCin)

    # 1x1 conv -> block-diagonal (W*Cin, W*Cmid) weight.
    w1k = jnp.kron(jnp.eye(W, dtype=jnp.float32), p['w1']).astype(jnp.bfloat16)

    # 3x3 conv -> ONE banded (3*W*Cmid, W*Cout) weight: row-block dh handles the
    # vertical tap; the band offset (eye(k=1-dw)) handles the horizontal tap and
    # the left/right zero padding (missing band entries == zero pad).
    w2big = jnp.zeros((3, W, Cmid, W, Cout), jnp.float32)
    for dw in range(3):
        band = jnp.eye(W, k=1 - dw, dtype=jnp.float32)        # band[w_in, w_out]
        w2big = w2big + jnp.einsum('xw,dco->dxcwo', band, p['w2'][:, dw])
    w2big = w2big.reshape(3 * WCmid, WCout).astype(jnp.bfloat16)

    # Per-channel affines tiled across W (kernel rows are (.., W*C)).
    s1w = jnp.tile(s1, W).reshape(1, WCmid)
    t1w = jnp.tile(t1, W).reshape(1, WCmid)
    s23w = jnp.tile(s23, W).reshape(1, WCout)
    s3w = jnp.tile(s3, W).reshape(1, WCout)
    t23w = jnp.tile(t23, W).reshape(1, WCout)

    Nb = _pick_batch_block(N, H, W, Cin, Cout, Cmid)

    out3 = pl.pallas_call(
        _bottleneck_kernel,
        out_shape=jax.ShapeDtypeStruct((N, H, WCout), jnp.float32),
        grid_spec=pltpu.PrefetchScalarGridSpec(
            num_scalar_prefetch=0,
            grid=(N // Nb,),
            in_specs=[
                pl.BlockSpec((Nb, H, WCin), lambda n: (n, 0, 0)),
                pl.BlockSpec((WCin, WCmid), lambda n: (0, 0)),
                pl.BlockSpec((3 * WCmid, WCout), lambda n: (0, 0)),
                pl.BlockSpec((1, WCmid), lambda n: (0, 0)),
                pl.BlockSpec((1, WCmid), lambda n: (0, 0)),
                pl.BlockSpec((1, WCout), lambda n: (0, 0)),
                pl.BlockSpec((1, WCout), lambda n: (0, 0)),
                pl.BlockSpec((1, WCout), lambda n: (0, 0)),
            ],
            out_specs=pl.BlockSpec((Nb, H, WCout), lambda n: (n, 0, 0)),
            scratch_shapes=[pltpu.VMEM((Nb, H, 3 * WCmid), jnp.bfloat16)],
        ),
        compiler_params=pltpu.CompilerParams(
            dimension_semantics=("parallel",)),
    )(x3, w1k, w2big, s1w, t1w, s23w, s3w, t23w)

    out = out3.reshape(N, H, W, Cout)
    return jnp.transpose(out, (0, 3, 1, 2))    # -> NCHW


def init_params(key, inplanes, planes, hg=2):
    """Deterministic synthetic parameters matching the module's __init__ shapes."""
    cmid = inplanes // hg
    ks = jax.random.split(key, 16)

    def n(k, shape, s=0.1):
        return jax.random.normal(k, shape, jnp.float32) * s

    return dict(
        # reduce: 1x1 conv (stored as (Cin, Cmid)) + BN
        w1=n(ks[0], (inplanes, cmid), 0.2), b1=n(ks[1], (cmid,), 0.1),
        g1=1.0 + n(ks[2], (cmid,), 0.1), be1=n(ks[3], (cmid,), 0.1),
        m1=n(ks[4], (cmid,), 0.1), v1=1.0 + jnp.abs(n(ks[5], (cmid,), 0.2)),
        # conv2: 3x3 conv (stored HWIO) + BN
        w2=n(ks[6], (3, 3, cmid, planes), 0.2), b2=n(ks[7], (planes,), 0.1),
        g2=1.0 + n(ks[8], (planes,), 0.1), be2=n(ks[9], (planes,), 0.1),
        m2=n(ks[10], (planes,), 0.1), v2=1.0 + jnp.abs(n(ks[11], (planes,), 0.2)),
        # final BN
        g3=1.0 + n(ks[12], (planes,), 0.1), be3=n(ks[13], (planes,), 0.1),
        m3=n(ks[14], (planes,), 0.1), v3=1.0 + jnp.abs(n(ks[15], (planes,), 0.2)),
    )


def ref_forward(x_nchw, p, eps=1e-5):
    """Pure-JAX f32 reference of the same forward pass (for verification)."""
    x = jnp.transpose(x_nchw, (0, 2, 3, 1)).astype(jnp.float32)
    mid = jnp.einsum('nhwc,cd->nhwd', x, p['w1'],
                     precision=lax.Precision.HIGHEST) + p['b1']
    mid = (mid - p['m1']) / jnp.sqrt(p['v1'] + eps) * p['g1'] + p['be1']
    mid = jnp.maximum(mid, 0.0)
    out = lax.conv_general_dilated(
        mid, p['w2'], (1, 1), 'SAME',
        dimension_numbers=('NHWC', 'HWIO', 'NHWC'),
        precision=lax.Precision.HIGHEST) + p['b2']
    out = (out - p['m2']) / jnp.sqrt(p['v2'] + eps) * p['g2'] + p['be2']
    out = out + x
    out = (out - p['m3']) / jnp.sqrt(p['v3'] + eps) * p['g3'] + p['be3']
    out = jnp.maximum(out, 0.0)
    return jnp.transpose(out, (0, 3, 1, 2))


if __name__ == "__main__":
    key = jax.random.PRNGKey(0)
    kx, kp = jax.random.split(key)

    # Shapes consistent with the module: inplanes == planes (residual), hg=2.
    # W*Cin = 128 -> exactly one lane row per image row.
    N, C, H, W = 2, 8, 16, 16
    x = jax.random.normal(kx, (N, C, H, W), jnp.float32)
    params = init_params(kp, inplanes=C, planes=C, hg=2)

    out = bottleneck_v2_forward(x, params)
    out = jax.block_until_ready(out)

    ref = ref_forward(x, params)
    assert out.shape == (N, C, H, W)
    # Matmul operands are bf16 (MXU fast path) with f32 accumulation and f32
    # elementwise math, so allow a slightly looser tolerance than pure f32.
    if not jnp.allclose(out, ref, atol=2e-2, rtol=2e-2):
        raise AssertionError(
            f"Pallas kernel mismatch vs reference, max err "
            f"{float(jnp.max(jnp.abs(out - ref)))}")

    print("KERNEL_OK")
</pallas_src>

<mosaic_0001>
module attributes {stable_mosaic.version = 11 : i64} {
  func.func @_bottleneck_kernel(%arg0: i32, %arg1: memref<2x16x128xf32, #tpu.memory_space<vmem>>, %arg2: memref<128x64xbf16, #tpu.memory_space<vmem>>, %arg3: memref<192x128xbf16, #tpu.memory_space<vmem>>, %arg4: memref<1x64xf32, #tpu.memory_space<vmem>>, %arg5: memref<1x64xf32, #tpu.memory_space<vmem>>, %arg6: memref<1x128xf32, #tpu.memory_space<vmem>>, %arg7: memref<1x128xf32, #tpu.memory_space<vmem>>, %arg8: memref<1x128xf32, #tpu.memory_space<vmem>>, %arg9: memref<2x16x128xf32, #tpu.memory_space<vmem>>, %arg10: memref<2x16x192xbf16, #tpu.memory_space<vmem>>) attributes {dimension_semantics = [#tpu.dimension_semantics<parallel>], iteration_bounds = array<i64: 1>, scalar_prefetch = 0 : i64, scratch_operands = 1 : i64, tpu.core_type = #tpu.core_type<tc>, window_params = [{transform_indices = @transform_0, window_bounds = array<i64: 2, 16, 128>}, {pipeline_mode = #tpu.pipeline_mode<synchronous>, transform_indices = @transform_1, window_bounds = array<i64: 128, 64>}, {pipeline_mode = #tpu.pipeline_mode<synchronous>, transform_indices = @transform_2, window_bounds = array<i64: 192, 128>}, {pipeline_mode = #tpu.pipeline_mode<synchronous>, transform_indices = @transform_3, window_bounds = array<i64: 1, 64>}, {pipeline_mode = #tpu.pipeline_mode<synchronous>, transform_indices = @transform_4, window_bounds = array<i64: 1, 64>}, {pipeline_mode = #tpu.pipeline_mode<synchronous>, transform_indices = @transform_5, window_bounds = array<i64: 1, 128>}, {pipeline_mode = #tpu.pipeline_mode<synchronous>, transform_indices = @transform_6, window_bounds = array<i64: 1, 128>}, {pipeline_mode = #tpu.pipeline_mode<synchronous>, transform_indices = @transform_7, window_bounds = array<i64: 1, 128>}, {transform_indices = @transform_8, window_bounds = array<i64: 2, 16, 128>}]} {
    %c0 = arith.constant 0 : index
    %c0_0 = arith.constant 0 : index
    %c0_1 = arith.constant 0 : index
    %0 = vector.load %arg1[%c0, %c0_0, %c0_1] : memref<2x16x128xf32, #tpu.memory_space<vmem>>, vector<2x16x128xf32>
    %1 = vector.shape_cast %0 : vector<2x16x128xf32> to vector<32x128xf32>
    %2 = arith.truncf %1 : vector<32x128xf32> to vector<32x128xbf16>
    %c0_2 = arith.constant 0 : index
    %c0_3 = arith.constant 0 : index
    %3 = vector.load %arg2[%c0_2, %c0_3] : memref<128x64xbf16, #tpu.memory_space<vmem>>, vector<128x64xbf16>
    %cst = arith.constant dense<0.000000e+00> : vector<32x64xf32>
    %4 = tpu.matmul %2, %3, %cst {dimension_numbers = #tpu.dot_dimension_numbers<[1], [0], [0], [1], [0, 0, 1, 1], [], []>} : vector<32x128xbf16>, vector<128x64xbf16>, vector<32x64xf32> -> vector<32x64xf32>
    %c0_4 = arith.constant 0 : index
    %c0_5 = arith.constant 0 : index
    %5 = vector.load %arg4[%c0_4, %c0_5] : memref<1x64xf32, #tpu.memory_space<vmem>>, vector<1x64xf32>
    %6 = vector.broadcast %5 : vector<1x64xf32> to vector<32x64xf32>
    %7 = arith.mulf %4, %6 : vector<32x64xf32>
    %c0_6 = arith.constant 0 : index
    %c0_7 = arith.constant 0 : index
    %8 = vector.load %arg5[%c0_6, %c0_7] : memref<1x64xf32, #tpu.memory_space<vmem>>, vector<1x64xf32>
    %9 = vector.broadcast %8 : vector<1x64xf32> to vector<32x64xf32>
    %10 = arith.addf %7, %9 : vector<32x64xf32>
    %cst_8 = arith.constant 0.000000e+00 : f32
    %11 = vector.broadcast %cst_8 : f32 to vector<32x64xf32>
    %12 = arith.maximumf %10, %11 : vector<32x64xf32>
    %13 = arith.truncf %12 : vector<32x64xf32> to vector<32x64xbf16>
    %14 = vector.shape_cast %13 : vector<32x64xbf16> to vector<2x16x64xbf16>
    %cst_9 = arith.constant 0.000000e+00 : bf16
    %15 = vector.broadcast %cst_9 : bf16 to vector<2x1x64xbf16>
    %c0_10 = arith.constant 0 : index
    %c0_11 = arith.constant 0 : index
    %c64 = arith.constant 64 : index
    %16 = vector.load %arg10[%c0_10, %c0_11, %c64] : memref<2x16x192xbf16, #tpu.memory_space<vmem>>, vector<2x16x64xbf16>
    tpu.vector_store %arg10[%c0_10, %c0_11, %c64], %14 {strides = array<i32>} : memref<2x16x192xbf16, #tpu.memory_space<vmem>>, vector<2x16x64xbf16>,
    %17 = vector.extract_strided_slice %14 {offsets = [0, 0, 0], sizes = [2, 15, 64], strides = [1, 1, 1]} : vector<2x16x64xbf16> to vector<2x15x64xbf16>
    %c0_12 = arith.constant 0 : index
    %c1 = arith.constant 1 : index
    %c0_13 = arith.constant 0 : index
    %18 = vector.load %arg10[%c0_12, %c1, %c0_13] : memref<2x16x192xbf16, #tpu.memory_space<vmem>>, vector<2x15x64xbf16>
    tpu.vector_store %arg10[%c0_12, %c1, %c0_13], %17 {strides = array<i32>} : memref<2x16x192xbf16, #tpu.memory_space<vmem>>, vector<2x15x64xbf16>,
    %c0_14 = arith.constant 0 : index
    %c0_15 = arith.constant 0 : index
    %c0_16 = arith.constant 0 : index
    %19 = vector.load %arg10[%c0_14, %c0_15, %c0_16] : memref<2x16x192xbf16, #tpu.memory_space<vmem>>, vector<2x1x64xbf16>
    tpu.vector_store %arg10[%c0_14, %c0_15, %c0_16], %15 {strides = array<i32>} : memref<2x16x192xbf16, #tpu.memory_space<vmem>>, vector<2x1x64xbf16>,
    %20 = vector.extract_strided_slice %14 {offsets = [0, 1, 0], sizes = [2, 15, 64], strides = [1, 1, 1]} : vector<2x16x64xbf16> to vector<2x15x64xbf16>
    %c0_17 = arith.constant 0 : index
    %c0_18 = arith.constant 0 : index
    %c128 = arith.constant 128 : index
    %21 = vector.load %arg10[%c0_17, %c0_18, %c128] : memref<2x16x192xbf16, #tpu.memory_space<vmem>>, vector<2x15x64xbf16>
    tpu.vector_store %arg10[%c0_17, %c0_18, %c128], %20 {strides = array<i32>} : memref<2x16x192xbf16, #tpu.memory_space<vmem>>, vector<2x15x64xbf16>,
    %c0_19 = arith.constant 0 : index
    %c15 = arith.constant 15 : index
    %c128_20 = arith.constant 128 : index
    %22 = vector.load %arg10[%c0_19, %c15, %c128_20] : memref<2x16x192xbf16, #tpu.memory_space<vmem>>, vector<2x1x64xbf16>
    tpu.vector_store %arg10[%c0_19, %c15, %c128_20], %15 {strides = array<i32>} : memref<2x16x192xbf16, #tpu.memory_space<vmem>>, vector<2x1x64xbf16>,
    %c0_21 = arith.constant 0 : index
    %c0_22 = arith.constant 0 : index
    %c0_23 = arith.constant 0 : index
    %23 = vector.load %arg10[%c0_21, %c0_22, %c0_23] : memref<2x16x192xbf16, #tpu.memory_space<vmem>>, vector<2x16x192xbf16>
    %24 = vector.shape_cast %23 : vector<2x16x192xbf16> to vector<32x192xbf16>
    %c0_24 = arith.constant 0 : index
    %c0_25 = arith.constant 0 : index
    %25 = vector.load %arg3[%c0_24, %c0_25] : memref<192x128xbf16, #tpu.memory_space<vmem>>, vector<192x128xbf16>
    %cst_26 = arith.constant dense<0.000000e+00> : vector<32x128xf32>
    %26 = tpu.matmul %24, %25, %cst_26 {dimension_numbers = #tpu.dot_dimension_numbers<[1], [0], [0], [1], [0, 0, 1, 1], [], []>} : vector<32x192xbf16>, vector<192x128xbf16>, vector<32x128xf32> -> vector<32x128xf32>
    %c0_27 = arith.constant 0 : index
    %c0_28 = arith.constant 0 : index
    %27 = vector.load %arg6[%c0_27, %c0_28] : memref<1x128xf32, #tpu.memory_space<vmem>>, vector<1x128xf32>
    %28 = vector.broadcast %27 : vector<1x128xf32> to vector<32x128xf32>
    %29 = arith.mulf %26, %28 : vector<32x128xf32>
    %c0_29 = arith.constant 0 : index
    %c0_30 = arith.constant 0 : index
    %30 = vector.load %arg7[%c0_29, %c0_30] : memref<1x128xf32, #tpu.memory_space<vmem>>, vector<1x128xf32>
    %31 = vector.broadcast %30 : vector<1x128xf32> to vector<32x128xf32>
    %32 = arith.mulf %1, %31 : vector<32x128xf32>
    %33 = arith.addf %29, %32 : vector<32x128xf32>
    %c0_31 = arith.constant 0 : index
    %c0_32 = arith.constant 0 : index
    %34 = vector.load %arg8[%c0_31, %c0_32] : memref<1x128xf32, #tpu.memory_space<vmem>>, vector<1x128xf32>
    %35 = vector.broadcast %34 : vector<1x128xf32> to vector<32x128xf32>
    %36 = arith.addf %33, %35 : vector<32x128xf32>
    %cst_33 = arith.constant 0.000000e+00 : f32
    %37 = vector.broadcast %cst_33 : f32 to vector<32x128xf32>
    %38 = arith.maximumf %36, %37 : vector<32x128xf32>
    %39 = vector.shape_cast %38 : vector<32x128xf32> to vector<2x16x128xf32>
    %c0_34 = arith.constant 0 : index
    %c0_35 = arith.constant 0 : index
    %c0_36 = arith.constant 0 : index
    %40 = vector.load %arg9[%c0_34, %c0_35, %c0_36] : memref<2x16x128xf32, #tpu.memory_space<vmem>>, vector<2x16x128xf32>
    tpu.vector_store %arg9[%c0_34, %c0_35, %c0_36], %39 {strides = array<i32>} : memref<2x16x128xf32, #tpu.memory_space<vmem>>, vector<2x16x128xf32>,
    return
  }
  func.func @transform_0(%arg0: i32) -> (i32, i32, i32) {
    %c0_i32 = arith.constant 0 : i32
    %c0_i32_0 = arith.constant 0 : i32
    %c0_i32_1 = arith.constant 0 : i32
    return %arg0, %c0_i32, %c0_i32_0 : i32, i32, i32
  }
  func.func @transform_1(%arg0: i32) -> (i32, i32) {
    %c0_i32 = arith.constant 0 : i32
    %c0_i32_0 = arith.constant 0 : i32
    %c0_i32_1 = arith.constant 0 : i32
    return %c0_i32, %c0_i32_0 : i32, i32
  }
  func.func @transform_2(%arg0: i32) -> (i32, i32) {
    %c0_i32 = arith.constant 0 : i32
    %c0_i32_0 = arith.constant 0 : i32
    %c0_i32_1 = arith.constant 0 : i32
    return %c0_i32, %c0_i32_0 : i32, i32
  }
  func.func @transform_3(%arg0: i32) -> (i32, i32) {
    %c0_i32 = arith.constant 0 : i32
    %c0_i32_0 = arith.constant 0 : i32
    %c0_i32_1 = arith.constant 0 : i32
    return %c0_i32, %c0_i32_0 : i32, i32
  }
  func.func @transform_4(%arg0: i32) -> (i32, i32) {
    %c0_i32 = arith.constant 0 : i32
    %c0_i32_0 = arith.constant 0 : i32
    %c0_i32_1 = arith.constant 0 : i32
    return %c0_i32, %c0_i32_0 : i32, i32
  }
  func.func @transform_5(%arg0: i32) -> (i32, i32) {
    %c0_i32 = arith.constant 0 : i32
    %c0_i32_0 = arith.constant 0 : i32
    %c0_i32_1 = arith.constant 0 : i32
    return %c0_i32, %c0_i32_0 : i32, i32
  }
  func.func @transform_6(%arg0: i32) -> (i32, i32) {
    %c0_i32 = arith.constant 0 : i32
    %c0_i32_0 = arith.constant 0 : i32
    %c0_i32_1 = arith.constant 0 : i32
    return %c0_i32, %c0_i32_0 : i32, i32
  }
  func.func @transform_7(%arg0: i32) -> (i32, i32) {
    %c0_i32 = arith.constant 0 : i32
    %c0_i32_0 = arith.constant 0 : i32
    %c0_i32_1 = arith.constant 0 : i32
    return %c0_i32, %c0_i32_0 : i32, i32
  }
  func.func @transform_8(%arg0: i32) -> (i32, i32, i32) {
    %c0_i32 = arith.constant 0 : i32
    %c0_i32_0 = arith.constant 0 : i32
    %c0_i32_1 = arith.constant 0 : i32
    return %arg0, %c0_i32, %c0_i32_0 : i32, i32, i32
  }
}

</mosaic_0001>

<llo_original>
// kernel: tpu_custom_call.1
$region0: #{tpu_custom_call.1}
  #allocation0 [shape = 'u32[]', space=smem, size = 0x4, offset = 0x4, fixed_abs, tag = 'smem constant byte address 0x4 - core index']
  #allocation1 [shape = 'u32[144,128]{1,0:T(1,128)}', space=vmem, size = 0x12000, scoped, tag = 'internal scratch']
  #allocation2 [shape = 'bf16[2,16,192]{2,1,0:T(8,128)(2,1)}', space=vmem, size = 0x4000, scoped, tag = 'scratch operand']
  %s0 = inlined_call_operand.hbm [shape: f32[2,16,128], index: 0, kind: input, shape index: {}]
  %s1 = inlined_call_operand.vmem [shape: bf16[128,64], index: 1, kind: input, shape index: {}]
  %s2 = inlined_call_operand.vmem [shape: bf16[192,128], index: 2, kind: input, shape index: {}]
  %s3 = inlined_call_operand.vmem [shape: f32[1,64], index: 3, kind: input, shape index: {}]
  %s4 = inlined_call_operand.vmem [shape: f32[1,64], index: 4, kind: input, shape index: {}]
  %s5 = inlined_call_operand.vmem [shape: f32[1,128], index: 5, kind: input, shape index: {}]
  %s6 = inlined_call_operand.vmem [shape: f32[1,128], index: 6, kind: input, shape index: {}]
  %s7 = inlined_call_operand.vmem [shape: f32[1,128], index: 7, kind: input, shape index: {}]
  %s8 = inlined_call_operand.hbm [shape: f32[2,16,128], index: 8, kind: output, shape index: {}]
  %s9 = sld [smem:[#allocation0]]
  $region46: #{tpu_custom_call.1} parent=0
    _
  %s11 = ssub.s32 1, %s9
  %s12 = scalar_select 0, %s11, %s9
  $region1: #{tpu_custom_call.1} parent=0
    #allocation3 [shape = 'u8[16384]{0}', space=vmem, size = 0x4000, scoped, tag = 'input window, operand 0, single buffered']
    #allocation4 [shape = 's32[1]{0}', space=sflag, size = 0x4, scoped, tag = 'scoped memory for tpu_custom_call.1']
    #allocation5 [shape = 's32[1]{0}', space=sflag, size = 0x4, scoped, tag = 'scoped memory for tpu_custom_call.1']
    #allocation6 [shape = 'u8[16384]{0}', space=vmem, size = 0x4000, scoped, tag = 'output window, operand 0, single buffered']
    %13 = vsyncpa [#allocation4], 0
    %14 = vsyncpa [#allocation5], 0
    // Predicated region
    $region2: #{tpu_custom_call.1} parent=1 // pred_check
      _
    $region3: #{tpu_custom_call.1} parent=1 // pred_check_branch
      %16 = sbr.rel (0) target = $region5
    $region4: #{tpu_custom_call.1} parent=1 // pred_region
      %s18 = ssub.s32 512, 512
      %19 = vsyncadd [#allocation4], %s18
      %s20 = sshll.u32 [#allocation3], 4
      %s21 = int_to_ptr.vmem [resolvable:$true] %s20
      %26 = dma.hbm_to_vmem [thread:$0]  %s0, 512, %s21, [#allocation4], 128, 128, 8
    $region5: #{tpu_custom_call.1} parent=1 // pred_fallthru
      _
    // Predicated region
    $region6: #{tpu_custom_call.1} parent=1 // pred_check
      _
    $region7: #{tpu_custom_call.1} parent=1 // pred_check_branch
      %28 = sbr.rel (0) target = $region9
    $region8: #{tpu_custom_call.1} parent=1 // pred_region
      _
    $region9: #{tpu_custom_call.1} parent=1 // pred_fallthru
      _
    // Predicated region
    $region10: #{tpu_custom_call.1} parent=1 // pred_check
      _
    $region11: #{tpu_custom_call.1} parent=1 // pred_check_branch
      %30 = sbr.rel (0) target = $region13
    $region12: #{tpu_custom_call.1} parent=1 // pred_region
      _
    $region13: #{tpu_custom_call.1} parent=1 // pred_fallthru
      _
    // Predicated region
    $region14: #{tpu_custom_call.1} parent=1 // pred_check
      _
    $region15: #{tpu_custom_call.1} parent=1 // pred_check_branch
      %32 = sbr.rel (0) target = $region17
    $region16: #{tpu_custom_call.1} parent=1 // pred_region
      _
    $region17: #{tpu_custom_call.1} parent=1 // pred_fallthru
      _
    // Predicated region
    $region18: #{tpu_custom_call.1} parent=1 // pred_check
      _
    $region19: #{tpu_custom_call.1} parent=1 // pred_check_branch
      %34 = sbr.rel (0) target = $region21
    $region20: #{tpu_custom_call.1} parent=1 // pred_region
      _
    $region21: #{tpu_custom_call.1} parent=1 // pred_fallthru
      _
    // Predicated region
    $region22: #{tpu_custom_call.1} parent=1 // pred_check
      _
    $region23: #{tpu_custom_call.1} parent=1 // pred_check_branch
      %36 = sbr.rel (0) target = $region25
    $region24: #{tpu_custom_call.1} parent=1 // pred_region
      _
    $region25: #{tpu_custom_call.1} parent=1 // pred_fallthru
      _
    // Predicated region
    $region26: #{tpu_custom_call.1} parent=1 // pred_check
      _
    $region27: #{tpu_custom_call.1} parent=1 // pred_check_branch
      %38 = sbr.rel (0) target = $region29
    $region28: #{tpu_custom_call.1} parent=1 // pred_region
      _
    $region29: #{tpu_custom_call.1} parent=1 // pred_fallthru
      _
    // Predicated region
    $region30: #{tpu_custom_call.1} parent=1 // pred_check
      _
    $region31: #{tpu_custom_call.1} parent=1 // pred_check_branch
      %40 = sbr.rel (0) target = $region33
    $region32: #{tpu_custom_call.1} parent=1 // pred_region
      _
    $region33: #{tpu_custom_call.1} parent=1 // pred_fallthru
      _
    // Predicated region
    $region34: #{tpu_custom_call.1} parent=1 // pred_check
      _
    $region35: #{tpu_custom_call.1} parent=1 // pred_check_branch
      %42 = sbr.rel (0) target = $region37
    $region36: #{tpu_custom_call.1} parent=1 // pred_region
      %43 = dma.done [#allocation4], 512
    $region37: #{tpu_custom_call.1} parent=1 // pred_fallthru
      _
    %v45 = vld [vmem:[#allocation3] sm:$0xff]
    %v46 = vld [vmem:[#allocation3 + $0x8] sm:$0xff]
    %v47 = vld [vmem:[#allocation3 + $0x10] sm:$0xff]
    %v48 = vld [vmem:[#allocation3 + $0x18] sm:$0xff]
    %v49 = vpack.c.bf16 %v46, %v45
    %v50 = vpack.c.bf16 %v48, %v47
    %v51 = vld [vmem:[%s1] sm:$0xf]
    %v52 = vld [vmem:[%s1 + $0x4] sm:$0xf]
    %v53 = vld [vmem:[%s1 + $0x8] sm:$0xf]
    %v54 = vld [vmem:[%s1 + $0xc] sm:$0xf]
    %v55 = vld [vmem:[%s1 + $0x10] sm:$0xf]
    %v56 = vld [vmem:[%s1 + $0x14] sm:$0xf]
    %v57 = vld [vmem:[%s1 + $0x18] sm:$0xf]
    %v58 = vld [vmem:[%s1 + $0x1c] sm:$0xf]
    %v59 = vld [vmem:[%s1 + $0x20] sm:$0xf]
    %v60 = vld [vmem:[%s1 + $0x24] sm:$0xf]
    %v61 = vld [vmem:[%s1 + $0x28] sm:$0xf]
    %v62 = vld [vmem:[%s1 + $0x2c] sm:$0xf]
    %v63 = vld [vmem:[%s1 + $0x30] sm:$0xf]
    %v64 = vld [vmem:[%s1 + $0x34] sm:$0xf]
    %v65 = vld [vmem:[%s1 + $0x38] sm:$0xf]
    %v66 = vld [vmem:[%s1 + $0x3c] sm:$0xf]
    %v83 = vunpack.c.l.b16 %v51
    %v84 = vunpack.c.l.b16 %v52
    %v85 = vunpack.c.l.b16 %v53
    %v86 = vunpack.c.l.b16 %v54
    %v87 = vunpack.c.l.b16 %v55
    %v88 = vunpack.c.l.b16 %v56
    %v89 = vunpack.c.l.b16 %v57
    %v90 = vunpack.c.l.b16 %v58
    %v91 = vunpack.c.l.b16 %v59
    %v92 = vunpack.c.l.b16 %v60
    %v93 = vunpack.c.l.b16 %v61
    %v94 = vunpack.c.l.b16 %v62
    %v95 = vunpack.c.l.b16 %v63
    %v96 = vunpack.c.l.b16 %v64
    %v97 = vunpack.c.l.b16 %v65
    %v98 = vunpack.c.l.b16 %v66
    %v99 = vpack.c.b16 %v84, %v83
    %v100 = vpack.c.b16 %v86, %v85
    %v101 = vpack.c.b16 %v88, %v87
    %v102 = vpack.c.b16 %v90, %v89
    %v103 = vpack.c.b16 %v92, %v91
    %v104 = vpack.c.b16 %v94, %v93
    %v105 = vpack.c.b16 %v96, %v95
    %v106 = vpack.c.b16 %v98, %v97
    %115 = vmatprep.subr.bf16.mxu0 0
    %116 = vmatpush1.bf16.msra.mxu0 %v106
    %117 = vmatprep.subr.bf16.mxu0 0
    %118 = vmatpush1.bf16.msra.mxu0 %v105
    %119 = vmatprep.subr.bf16.mxu0 0
    %120 = vmatpush1.bf16.msra.mxu0 %v104
    %121 = vmatprep.subr.bf16.mxu0 0
    %122 = vmatpush1.bf16.msra.mxu0 %v103
    %123 = vmatprep.subr.bf16.mxu0 0
    %124 = vmatpush1.bf16.msra.mxu0 %v102
    %125 = vmatprep.subr.bf16.mxu0 0
    %126 = vmatpush1.bf16.msra.mxu0 %v101
    %127 = vmatprep.subr.bf16.mxu0 0
    %128 = vmatpush1.bf16.msra.mxu0 %v100
    %129 = vmatprep.subr.bf16.mxu0 0
    %130 = vmatpush1.bf16.msra.mxu0 %v99
    %131 = vmatprep.subr.bf16.mxu0 0
    %132 = vmatpush2.bf16.msra.mxu0 0
    %133 = vmatprep.subr.bf16.mxu0 0
    %134 = vmatpush2.bf16.msra.mxu0 0
    %135 = vmatprep.subr.bf16.mxu0 0
    %136 = vmatpush2.bf16.msra.mxu0 0
    %137 = vmatprep.subr.bf16.mxu0 0
    %138 = vmatpush2.bf16.msra.mxu0 0
    %139 = vmatprep.subr.bf16.mxu0 0
    %140 = vmatpush2.bf16.msra.mxu0 0
    %141 = vmatprep.subr.bf16.mxu0 0
    %142 = vmatpush2.bf16.msra.mxu0 0
    %143 = vmatprep.subr.bf16.mxu0 0
    %144 = vmatpush2.bf16.msra.mxu0 0
    %145 = vmatprep.subr.bf16.mxu0 0
    %146 = vmatpush2.bf16.msra.mxu0 0
    %147 = vmatprep.mubr.bf16.mxu0 0
    %148 = vmatmul.mubr.bf16.gmra.mxu0 %v49
    %v149 = vpop.f32.mrf.mxu0
    %v150 = vadd.f32 0.0, %v149
    %v151 = vpop.f32.mrf.mxu0
    %v152 = vpop.f32.mrf.mxu0
    %v153 = vadd.f32 0.0, %v152
    %v154 = vpop.f32.mrf.mxu0
    %155 = vmatprep.mubr.bf16.mxu0 0
    %156 = vmatmul.mubr.bf16.gmra.mxu0 %v50
    %v157 = vpop.f32.mrf.mxu0
    %v158 = vadd.f32 0.0, %v157
    %v159 = vpop.f32.mrf.mxu0
    %v160 = vpop.f32.mrf.mxu0
    %v161 = vadd.f32 0.0, %v160
    %v162 = vpop.f32.mrf.mxu0
    %163 = vdwg.mxu0
    %v164 = vld [vmem:[%s3] sm:$0x1]
    %v166 = vlaneseq
    %v167 = vshrl.u32 %v166, 7
    %v168 = vsub.s32 0, %v167
    %v169 = vrot.slane %v164, %v168
    %v171 = vmul.f32 %v150, %v169
    %v172 = vmul.f32 %v153, %v169
    %v173 = vmul.f32 %v158, %v169
    %v174 = vmul.f32 %v161, %v169
    %v175 = vld [vmem:[%s4] sm:$0x1]
    %v177 = vlaneseq
    %v178 = vshrl.u32 %v177, 7
    %v179 = vsub.s32 0, %v178
    %v180 = vrot.slane %v175, %v179
    %v182 = vadd.f32 %v171, %v180
    %v183 = vadd.f32 %v172, %v180
    %v184 = vadd.f32 %v173, %v180
    %v185 = vadd.f32 %v174, %v180
    %v186 = vmax.f32 %v182, 0.0
    %v187 = vmax.f32 %v183, 0.0
    %v188 = vmax.f32 %v184, 0.0
    %v189 = vmax.f32 %v185, 0.0
    %v190 = vpack.c.bf16 %v187, %v186
    %v191 = vpack.c.bf16 %v189, %v188
    %v194 = vunpack.c.l.b16 %v190
    %v195 = vunpack.c.h.b16 %v190
    %v196 = vunpack.c.l.b16 %v191
    %v197 = vunpack.c.h.b16 %v191
    %v198 = vpack.c.b16 %v194, %v194
    %v199 = vpack.c.b16 %v195, %v195
    %v200 = vpack.c.b16 %v196, %v196
    %v201 = vpack.c.b16 %v197, %v197
    %202 = vrot.lane.b32.xlu0 %v198, 64
    %v203 = vpop.permute.xlu0 %202
    %204 = vrot.lane.b32.xlu0 %v199, 64
    %v205 = vpop.permute.xlu0 %204
    %206 = vrot.lane.b32.xlu0 %v200, 64
    %v207 = vpop.permute.xlu0 %206
    %208 = vrot.lane.b32.xlu0 %v201, 64
    %v209 = vpop.permute.xlu0 %208
    %vm214 = vcmask 1043968
    %215 = vst.msk [vmem:[#allocation2] sm:$0xf] %vm214, %v203
    %216 = vst.msk [vmem:[#allocation2 + $0x8] sm:$0xf] %vm214, %v205
    %217 = vst.msk [vmem:[#allocation2 + $0x10] sm:$0xf] %vm214, %v207
    %218 = vst.msk [vmem:[#allocation2 + $0x18] sm:$0xf] %vm214, %v209
    %vm219 = vsmask.f32 256
    %vm220 = vsmask.f32 4368
    %vm221 = vmor %vm219, %vm220
    %v223 = vshrl.u32 %v198, 16
    %v225 = vrot.slane %v223, 7
    %v226 = vshll.u32 %v198, 16
    %v228 = vor.u32 %v225, %v226
    %v229 = vrot.slane %v225, 4
    %v231 = vshrl.u32 %v199, 16
    %v233 = vrot.slane %v231, 7
    %v234 = vshll.u32 %v199, 16
    %v236 = vor.u32 %v233, %v234
    %v237 = vsel %vm221, %v229, %v236
    %v239 = vshrl.u32 %v200, 16
    %v241 = vrot.slane %v239, 7
    %v242 = vshll.u32 %v200, 16
    %v244 = vor.u32 %v241, %v242
    %v245 = vrot.slane %v241, 4
    %v247 = vshrl.u32 %v201, 16
    %v249 = vrot.slane %v247, 7
    %v250 = vshll.u32 %v201, 16
    %v252 = vor.u32 %v249, %v250
    %v253 = vsel %vm221, %v245, %v252
    %vm258 = vcmask 519168
    %vm259 = vsmask.f32 7938
    %vm260 = vmand %vm258, %vm259
    %v261 = vld [vmem:[#allocation2] sm:$0xf]
    %v262 = vsel %vm260, %v228, %v261
    %263 = vst [vmem:[#allocation2] sm:$0xf] %v262
    %vm264 = vcmask 519168
    %265 = vst.msk [vmem:[#allocation2 + $0x8] sm:$0xf] %vm264, %v237
    %v266 = vld [vmem:[#allocation2 + $0x10] sm:$0xf]
    %v267 = vsel %vm260, %v244, %v266
    %268 = vst [vmem:[#allocation2 + $0x10] sm:$0xf] %v267
    %269 = vst.msk [vmem:[#allocation2 + $0x18] sm:$0xf] %vm264, %v253
    %vm270 = vcmask 516096
    %vm271 = vmand %vm270, %vm219
    %v272 = vld [vmem:[#allocation2] sm:$0x1]
    %v273 = vsel %vm271, 0, %v272
    %274 = vst [vmem:[#allocation2] sm:$0x1] %v273
    %v275 = vld [vmem:[#allocation2 + $0x10] sm:$0x1]
    %v276 = vsel %vm271, 0, %v275
    %277 = vst [vmem:[#allocation2 + $0x10] sm:$0x1] %v276
    %vm278 = vsmask.f32 3328
    %vm279 = vsmask.f32 7440
    %vm280 = vmor %vm278, %vm279
    %v281 = vrot.slane %v223, 4
    %v282 = vrot.slane %v226, 5
    %v283 = vor.u32 %v281, %v282
    %v284 = vrot.slane %v283, 4
    %v285 = vrot.slane %v234, 5
    %v286 = vsel %vm280, %v284, %v285
    %v287 = vrot.slane %v231, 4
    %v288 = vor.u32 %v287, %v285
    %v289 = vrot.slane %v288, 4
    %v290 = vrot.slane %v239, 4
    %v291 = vrot.slane %v242, 5
    %v292 = vor.u32 %v290, %v291
    %v293 = vrot.slane %v292, 4
    %v294 = vrot.slane %v250, 5
    %v295 = vsel %vm280, %v293, %v294
    %v296 = vrot.slane %v247, 4
    %v297 = vor.u32 %v296, %v294
    %v298 = vrot.slane %v297, 4
    %303 = vst.msk [vmem:[#allocation2 + $0x4] sm:$0xf] %vm264, %v286
    %vm304 = vmand %vm258, %vm278
    %v305 = vld [vmem:[#allocation2 + $0xc] sm:$0xf]
    %v306 = vsel %vm304, %v289, %v305
    %307 = vst [vmem:[#allocation2 + $0xc] sm:$0xf] %v306
    %308 = vst.msk [vmem:[#allocation2 + $0x14] sm:$0xf] %vm264, %v295
    %v309 = vld [vmem:[#allocation2 + $0x1c] sm:$0xf]
    %v310 = vsel %vm304, %v298, %v309
    %311 = vst [vmem:[#allocation2 + $0x1c] sm:$0xf] %v310
    %vm312 = vcmask 519171
    %vm313 = vsmask.f32 7950
    %vm314 = vmand %vm312, %vm313
    %v315 = vld [vmem:[#allocation2 + $0xc] sm:$0x8]
    %v316 = vsel %vm314, 0, %v315
    %317 = vst [vmem:[#allocation2 + $0xc] sm:$0x8] %v316
    %v318 = vld [vmem:[#allocation2 + $0x1c] sm:$0x8]
    %v319 = vsel %vm314, 0, %v318
    %320 = vst [vmem:[#allocation2 + $0x1c] sm:$0x8] %v319
    %v321 = vld [vmem:[#allocation2] sm:$0xff]
    %v322 = vld [vmem:[#allocation2 + $0x8] sm:$0xff]
    %v323 = vld [vmem:[#allocation2 + $0x10] sm:$0xff]
    %v324 = vld [vmem:[#allocation2 + $0x18] sm:$0xff]
    %v325 = vld [vmem:[%s2] sm:$0xf]
    %v326 = vld [vmem:[%s2 + $0x4] sm:$0xf]
    %v327 = vld [vmem:[%s2 + $0x8] sm:$0xf]
    %v328 = vld [vmem:[%s2 + $0xc] sm:$0xf]
    %v329 = vld [vmem:[%s2 + $0x10] sm:$0xf]
    %v330 = vld [vmem:[%s2 + $0x14] sm:$0xf]
    %v331 = vld [vmem:[%s2 + $0x18] sm:$0xf]
    %v332 = vld [vmem:[%s2 + $0x1c] sm:$0xf]
    %v333 = vld [vmem:[%s2 + $0x20] sm:$0xf]
    %v334 = vld [vmem:[%s2 + $0x24] sm:$0xf]
    %v335 = vld [vmem:[%s2 + $0x28] sm:$0xf]
    %v336 = vld [vmem:[%s2 + $0x2c] sm:$0xf]
    %v337 = vld [vmem:[%s2 + $0x30] sm:$0xf]
    %v338 = vld [vmem:[%s2 + $0x34] sm:$0xf]
    %v339 = vld [vmem:[%s2 + $0x38] sm:$0xf]
    %v340 = vld [vmem:[%s2 + $0x3c] sm:$0xf]
    %v341 = vld [vmem:[%s2 + $0x40] sm:$0xf]
    %v342 = vld [vmem:[%s2 + $0x44] sm:$0xf]
    %v343 = vld [vmem:[%s2 + $0x48] sm:$0xf]
    %v344 = vld [vmem:[%s2 + $0x4c] sm:$0xf]
    %v345 = vld [vmem:[%s2 + $0x50] sm:$0xf]
    %v346 = vld [vmem:[%s2 + $0x54] sm:$0xf]
    %v347 = vld [vmem:[%s2 + $0x58] sm:$0xf]
    %v348 = vld [vmem:[%s2 + $0x5c] sm:$0xf]
    %v353 = vunpack.c.l.b16 %v321
    %v354 = vunpack.c.h.b16 %v321
    %v355 = vunpack.c.l.b16 %v322
    %v356 = vunpack.c.h.b16 %v322
    %v357 = vunpack.c.l.b16 %v323
    %v358 = vunpack.c.h.b16 %v323
    %v359 = vunpack.c.l.b16 %v324
    %v360 = vunpack.c.h.b16 %v324
    %v361 = vpack.c.b16 %v355, %v353
    %v362 = vpack.c.b16 %v356, %v354
    %v363 = vpack.c.b16 %v359, %v357
    %v364 = vpack.c.b16 %v360, %v358
    %v391 = vunpack.c.l.b16 %v325
    %v392 = vunpack.c.l.b16 %v326
    %v393 = vunpack.c.l.b16 %v327
    %v394 = vunpack.c.l.b16 %v328
    %v395 = vunpack.c.l.b16 %v329
    %v396 = vunpack.c.l.b16 %v330
    %v397 = vunpack.c.l.b16 %v331
    %v398 = vunpack.c.l.b16 %v332
    %v399 = vunpack.c.l.b16 %v333
    %v400 = vunpack.c.l.b16 %v334
    %v401 = vunpack.c.l.b16 %v335
    %v402 = vunpack.c.l.b16 %v336
    %v403 = vunpack.c.l.b16 %v337
    %v404 = vunpack.c.l.b16 %v338
    %v405 = vunpack.c.l.b16 %v339
    %v406 = vunpack.c.l.b16 %v340
    %v407 = vunpack.c.l.b16 %v341
    %v408 = vunpack.c.l.b16 %v342
    %v409 = vunpack.c.l.b16 %v343
    %v410 = vunpack.c.l.b16 %v344
    %v411 = vunpack.c.l.b16 %v345
    %v412 = vunpack.c.l.b16 %v346
    %v413 = vunpack.c.l.b16 %v347
    %v414 = vunpack.c.l.b16 %v348
    %v415 = vpack.c.b16 %v392, %v391
    %v416 = vpack.c.b16 %v394, %v393
    %v417 = vpack.c.b16 %v396, %v395
    %v418 = vpack.c.b16 %v398, %v397
    %v419 = vpack.c.b16 %v400, %v399
    %v420 = vpack.c.b16 %v402, %v401
    %v421 = vpack.c.b16 %v404, %v403
    %v422 = vpack.c.b16 %v406, %v405
    %v423 = vpack.c.b16 %v408, %v407
    %v424 = vpack.c.b16 %v410, %v409
    %v425 = vpack.c.b16 %v412, %v411
    %v426 = vpack.c.b16 %v414, %v413
    %vm439 = vcmask 523264
    %v441 = vsel %vm439, %v362, 0
    %v444 = vsel %vm439, %v364, 0
    %446 = vmatprep.subr.bf16.mxu0 0
    %447 = vmatpush1.bf16.msra.mxu0 %v422
    %448 = vmatprep.subr.bf16.mxu0 0
    %449 = vmatpush1.bf16.msra.mxu0 %v421
    %450 = vmatprep.subr.bf16.mxu0 0
    %451 = vmatpush1.bf16.msra.mxu0 %v420
    %452 = vmatprep.subr.bf16.mxu0 0
    %453 = vmatpush1.bf16.msra.mxu0 %v419
    %454 = vmatprep.subr.bf16.mxu0 0
    %455 = vmatpush1.bf16.msra.mxu0 %v418
    %456 = vmatprep.subr.bf16.mxu0 0
    %457 = vmatpush1.bf16.msra.mxu0 %v417
    %458 = vmatprep.subr.bf16.mxu0 0
    %459 = vmatpush1.bf16.msra.mxu0 %v416
    %460 = vmatprep.subr.bf16.mxu0 0
    %461 = vmatpush1.bf16.msra.mxu0 %v415
    %462 = vmatprep.subr.bf16.mxu0 0
    %463 = vmatpush2.bf16.msra.mxu0 0
    %464 = vmatprep.subr.bf16.mxu0 0
    %465 = vmatpush2.bf16.msra.mxu0 0
    %466 = vmatprep.subr.bf16.mxu0 0
    %467 = vmatpush2.bf16.msra.mxu0 0
    %468 = vmatprep.subr.bf16.mxu0 0
    %469 = vmatpush2.bf16.msra.mxu0 0
    %470 = vmatprep.subr.bf16.mxu0 0
    %471 = vmatpush2.bf16.msra.mxu0 %v426
    %472 = vmatprep.subr.bf16.mxu0 0
    %473 = vmatpush2.bf16.msra.mxu0 %v425
    %474 = vmatprep.subr.bf16.mxu0 0
    %475 = vmatpush2.bf16.msra.mxu0 %v424
    %476 = vmatprep.subr.bf16.mxu0 0
    %477 = vmatpush2.bf16.msra.mxu0 %v423
    %478 = vmatprep.mubr.bf16.mxu0 %v441
    %479 = vmatmul.mubr.bf16.gmra.mxu0 %v361
    %v480 = vpop.f32.mrf.mxu0
    %v481 = vadd.f32 0.0, %v480
    %v482 = vpop.f32.mrf.mxu0
    %v483 = vpop.f32.mrf.mxu0
    %v484 = vadd.f32 0.0, %v483
    %v485 = vpop.f32.mrf.mxu0
    %486 = vmatprep.mubr.bf16.mxu0 %v444
    %487 = vmatmul.mubr.bf16.gmra.mxu0 %v363
    %v488 = vpop.f32.mrf.mxu0
    %v489 = vadd.f32 0.0, %v488
    %v490 = vpop.f32.mrf.mxu0
    %v491 = vpop.f32.mrf.mxu0
    %v492 = vadd.f32 0.0, %v491
    %v493 = vpop.f32.mrf.mxu0
    %494 = vdwg.mxu0
    %v495 = vld [vmem:[%s5] sm:$0x1]
    %v497 = vlaneseq
    %v498 = vshrl.u32 %v497, 7
    %v499 = vsub.s32 0, %v498
    %v500 = vrot.slane %v495, %v499
    %v502 = vmul.f32 %v481, %v500
    %v503 = vmul.f32 %v484, %v500
    %v504 = vmul.f32 %v489, %v500
    %v505 = vmul.f32 %v492, %v500
    %v506 = vld [vmem:[%s6] sm:$0x1]
    %v508 = vlaneseq
    %v509 = vshrl.u32 %v508, 7
    %v510 = vsub.s32 0, %v509
    %v511 = vrot.slane %v506, %v510
    %v513 = vmul.f32 %v45, %v511
    %v514 = vmul.f32 %v46, %v511
    %v515 = vmul.f32 %v47, %v511
    %v516 = vmul.f32 %v48, %v511
    %v517 = vadd.f32 %v502, %v513
    %v518 = vadd.f32 %v503, %v514
    %v519 = vadd.f32 %v504, %v515
    %v520 = vadd.f32 %v505, %v516
    %v521 = vld [vmem:[%s7] sm:$0x1]
    %v523 = vlaneseq
    %v524 = vshrl.u32 %v523, 7
    %v525 = vsub.s32 0, %v524
    %v526 = vrot.slane %v521, %v525
    %v528 = vadd.f32 %v517, %v526
    %v529 = vadd.f32 %v518, %v526
    %v530 = vadd.f32 %v519, %v526
    %v531 = vadd.f32 %v520, %v526
    %v532 = vmax.f32 %v528, 0.0
    %v533 = vmax.f32 %v529, 0.0
    %v534 = vmax.f32 %v530, 0.0
    %v535 = vmax.f32 %v531, 0.0
    %536 = vst [vmem:[#allocation6] sm:$0xff] %v532
    %537 = vst [vmem:[#allocation6 + $0x8] sm:$0xff] %v533
    %538 = vst [vmem:[#allocation6 + $0x10] sm:$0xff] %v534
    %539 = vst [vmem:[#allocation6 + $0x18] sm:$0xff] %v535
    // Predicated region
    $region38: #{tpu_custom_call.1} parent=1 // pred_check
      _
    $region39: #{tpu_custom_call.1} parent=1 // pred_check_branch
      %541 = sbr.rel (0) target = $region41
    $region40: #{tpu_custom_call.1} parent=1 // pred_region
      %s543 = ssub.s32 512, 512
      %544 = vsyncadd [#allocation5], %s543
      %s545 = sshll.u32 [#allocation6], 4
      %s546 = int_to_ptr.vmem [resolvable:$true] %s545
      %551 = dma.vmem_to_hbm [thread:$0]  %s546, 512, %s8, [#allocation5], 128, 128, 8
    $region41: #{tpu_custom_call.1} parent=1 // pred_fallthru
      _
    // Predicated region
    $region42: #{tpu_custom_call.1} parent=1 // pred_check
      _
    $region43: #{tpu_custom_call.1} parent=1 // pred_check_branch
      %553 = sbr.rel (0) target = $region45
    $region44: #{tpu_custom_call.1} parent=1 // pred_region
      %554 = dma.done [#allocation5], 512
    $region45: #{tpu_custom_call.1} parent=1 // pred_fallthru
      _
    %555 = vsyncpa [#allocation4], 1
    %556 = vsyncpa [#allocation5], 1

</llo_original>
